<compile_context>
chip_gen: v7x
topology: tpu7x:2x2x1
jax: 0.10.0
libtpu: 0.0.40
codegen_flags: <defaults>
</compile_context>

<pallas_src>
import functools
import math

import jax
import jax.numpy as jnp
from jax.experimental import pallas as pl
from jax.experimental.pallas import tpu as pltpu


_TB_CAP = 128                 # static-unroll bound for the tiny per-element MLP
_MIN_STEP_BYTES = 1 << 20     # don't shrink steps below ~1 MiB just to add more of them


def _round_up(a, b):
    return ((a + b - 1) // b) * b


def _sublane_multiple(dtype):
    return {4: 8, 2: 16, 1: 32}.get(jnp.dtype(dtype).itemsize, 8)


def _budgets():
    """(vmem_budget, vmem_limit, target_step_bytes) derived from the chip."""
    cap = 64 * 1024 * 1024
    try:
        info = pltpu.get_tpu_info()
        cap = int(getattr(info, "vmem_capacity_bytes", cap)) or cap
    except Exception:
        pass
    vmem_limit = min((cap * 3) // 4, 64 * 1024 * 1024)   # 48 MiB on v7x, 64 MiB on v5e/v6e
    vmem_budget = vmem_limit - 4 * 1024 * 1024           # headroom for compiler scratch
    # Higher-BW / smaller-VMEM parts (v7x) want larger steps to hide the
    # ~0.35us/step pipeline overhead.
    target_step = 6 * 1024 * 1024 if cap <= 64 * 1024 * 1024 else 3 * 1024 * 1024
    return vmem_budget, vmem_limit, target_step


# ----------------------------------------------------------------------------
# Fused kernel: pool + MLP + sigmoid gate + rescale for tb batch elements.
# x_ref / o_ref : (tb*C, HW) native dtype      gate_ref: (tb*C, 1) f32 scratch
# w1_ref (C,hid)=W1^T  b1_ref (1,hid)  w2_ref (C,hid)=W2  b2_ref (C,1)   all f32
# ----------------------------------------------------------------------------
def _fused_kernel(x_ref, w1_ref, b1_ref, w2_ref, b2_ref, o_ref, gate_ref, *,
                  inv_hw, tb, C):
    # Global average pool, vectorized over the whole block (f32 accumulation).
    s_col = jnp.sum(x_ref[...].astype(jnp.float32), axis=1, keepdims=True) * inv_hw

    w1 = w1_ref[...]
    b1 = b1_ref[...]
    w2 = w2_ref[...]
    b2 = b2_ref[...]

    # Tiny per-batch-element two-layer MLP (channel mixing).  All operands are
    # O(C*hid); the static unroll keeps no large temporaries live.
    for t in range(tb):
        s_t = s_col[t * C:(t + 1) * C, :]                    # (C, 1)
        h = jnp.sum(s_t * w1, axis=0, keepdims=True) + b1    # (1, hid)
        h = jnp.where(h >= 0.0, h, 0.05 * h)                 # LeakyReLU(0.05)
        z = jnp.sum(h * w2, axis=1, keepdims=True) + b2      # (C, 1)
        gate_ref[t * C:(t + 1) * C, :] = 1.0 / (1.0 + jnp.exp(-z))

    # Channel-wise rescale in the native dtype (only the tiny gate is cast).
    o_ref[...] = x_ref[...] * gate_ref[...].astype(o_ref.dtype)


# ----------------------------------------------------------------------------
# Split path, kernel 1: pool + MLP.  Grid (B, n_hw); hw axis is a reduction.
# x_ref: (1, C, thw) native   g_ref: (1, C, 1) f32   acc_ref: (C, 1) f32 scratch
# ----------------------------------------------------------------------------
def _gate_kernel(x_ref, w1_ref, b1_ref, w2_ref, b2_ref, g_ref, acc_ref, *,
                 inv_hw, hw, thw, needs_mask):
    s_idx = pl.program_id(1)

    @pl.when(s_idx == 0)
    def _():
        acc_ref[...] = jnp.zeros_like(acc_ref)

    x = x_ref[0].astype(jnp.float32)                         # (C, thw)
    if needs_mask:
        lane = jax.lax.broadcasted_iota(jnp.int32, x.shape, 1)
        x = jnp.where(s_idx * thw + lane < hw, x, 0.0)       # zero the ragged tail
    acc_ref[...] += jnp.sum(x, axis=1, keepdims=True)

    @pl.when(s_idx == pl.num_programs(1) - 1)
    def _():
        s = acc_ref[...] * inv_hw                                           # (C, 1)
        h = jnp.sum(s * w1_ref[...], axis=0, keepdims=True) + b1_ref[...]   # (1, hid)
        h = jnp.where(h >= 0.0, h, 0.05 * h)
        z = jnp.sum(h * w2_ref[...], axis=1, keepdims=True) + b2_ref[...]   # (C, 1)
        g_ref[0] = 1.0 / (1.0 + jnp.exp(-z))


# ----------------------------------------------------------------------------
# Split path, kernel 2: rescale.  Fully parallel 2-D grid.
# ----------------------------------------------------------------------------
def _rescale_kernel(x_ref, g_ref, o_ref):
    o_ref[0] = x_ref[0] * g_ref[0].astype(o_ref.dtype)


def se_recalibration(x, w1, b1, w2, b2, *, force_split=False, max_hw_tile=None):
    """SE channel recalibration, 2D mode.

    x : (B, C, H, W), any float dtype (kept native end-to-end).
    w1: (hid, C), b1: (hid,)  — first nn.Linear  (out = in @ W^T + b)
    w2: (C, hid), b2: (C,)    — second nn.Linear
    """
    B, C, H, W = x.shape
    hid = w1.shape[0]
    HW = H * W
    elt = x.dtype.itemsize
    inv_hw = 1.0 / float(HW)

    vmem_budget, vmem_limit, target_step = _budgets()
    sub = _sublane_multiple(x.dtype)
    hw_vmem = _round_up(HW, 128)

    # f32 MLP parameters, laid out for broadcast-and-reduce on the VPU/XLU.
    w1t = jnp.asarray(w1, jnp.float32).T                  # (C, hid) = W1^T
    b1r = jnp.asarray(b1, jnp.float32).reshape(1, hid)
    w2r = jnp.asarray(w2, jnp.float32).reshape(C, hid)    # = W2
    b2c = jnp.asarray(b2, jnp.float32).reshape(C, 1)

    bytes_io = 2 * B * C * HW * elt
    transc = B * C

    # ---------------- fused-path sizing --------------------------------------
    per_b_io = C * HW * elt
    # double-buffered in + out blocks, one f32 working copy, tiny MLP temps
    per_b_vmem = C * hw_vmem * (4 * elt + 4) + 16 * C * max(hid, 1)

    if C % sub == 0:
        align, min_tb = 1, 1
    else:
        align = sub // math.gcd(C, sub)
        # tb must be a multiple of `align` (sublane-aligned block rows) unless the
        # block covers the whole (B*C) row extent (full-dim blocks are exempt).
        min_tb = align if B > align else B

    fused_ok = (min_tb * per_b_vmem) <= vmem_budget

    if fused_ok and not force_split:
        # -------- single fused kernel: one HBM read + one HBM write of x -----
        tb = max(min_tb, target_step // max(per_b_io, 1))
        tb = min(tb, max(min_tb, vmem_budget // per_b_vmem), _TB_CAP, B)
        # Prefer >= 2 grid steps (DMA/compute overlap; feeds both v7x TCs) as
        # long as each step still moves a decent amount of HBM traffic.
        for steps in (4, 2):
            cand = B // steps
            if cand >= min_tb and cand * per_b_io >= _MIN_STEP_BYTES:
                tb = min(tb, cand)
                break
        if align > 1 and tb < B:
            tb = max(min_tb, (tb // align) * align)
        tb = max(1, min(tb, B))

        rows = tb * C
        nb = pl.cdiv(B, tb)                       # ragged last batch tile is OK
        x2 = x.reshape(B * C, HW)                 # sublane-dense, no HBM pad

        out2 = pl.pallas_call(
            functools.partial(_fused_kernel, inv_hw=inv_hw, tb=tb, C=C),
            out_shape=jax.ShapeDtypeStruct((B * C, HW), x.dtype),
            grid_spec=pltpu.PrefetchScalarGridSpec(
                num_scalar_prefetch=0,
                grid=(nb,),
                in_specs=[
                    pl.BlockSpec((rows, HW), lambda i: (i, 0)),
                    pl.BlockSpec((C, hid), lambda i: (0, 0)),
                    pl.BlockSpec((1, hid), lambda i: (0, 0)),
                    pl.BlockSpec((C, hid), lambda i: (0, 0)),
                    pl.BlockSpec((C, 1), lambda i: (0, 0)),
                ],
                out_specs=pl.BlockSpec((rows, HW), lambda i: (i, 0)),
                scratch_shapes=[pltpu.VMEM((rows, 1), jnp.float32)],
            ),
            compiler_params=pltpu.CompilerParams(
                dimension_semantics=("parallel",),
                vmem_limit_bytes=vmem_limit),
            cost_estimate=pl.CostEstimate(
                flops=int(3 * B * C * HW + 4 * B * C * max(hid, 1)),
                transcendentals=int(transc),
                bytes_accessed=int(bytes_io)),
        )(x2, w1t, b1r, w2r, b2c)
        return out2.reshape(B, C, H, W)

    # -------- large feature maps: HW-tiled gate kernel + parallel rescale ----
    x3 = x.reshape(B, C, HW)
    c_pad = _round_up(C, sub)
    n128 = pl.cdiv(HW, 128)
    chunk_vmem = c_pad * 128 * (4 * elt + 4)
    k = min(n128,
            max(1, target_step // max(C * 128 * elt, 1)),
            max(1, vmem_budget // max(chunk_vmem, 1)))
    if max_hw_tile is not None:
        k = min(k, max(1, max_hw_tile // 128))
    k = max(1, int(k))
    thw = HW if 128 * k >= HW else 128 * k        # full-dim block or 128-multiple
    n_hw = pl.cdiv(HW, thw)
    needs_mask = (HW % thw) != 0                  # ragged last HW tile

    gate = pl.pallas_call(
        functools.partial(_gate_kernel, inv_hw=inv_hw, hw=HW, thw=thw,
                          needs_mask=needs_mask),
        out_shape=jax.ShapeDtypeStruct((B, C, 1), jnp.float32),
        grid_spec=pltpu.PrefetchScalarGridSpec(
            num_scalar_prefetch=0,
            grid=(B, n_hw),
            in_specs=[
                pl.BlockSpec((1, C, thw), lambda b, s: (b, 0, s)),
                pl.BlockSpec((C, hid), lambda b, s: (0, 0)),
                pl.BlockSpec((1, hid), lambda b, s: (0, 0)),
                pl.BlockSpec((C, hid), lambda b, s: (0, 0)),
                pl.BlockSpec((C, 1), lambda b, s: (0, 0)),
            ],
            out_specs=pl.BlockSpec((1, C, 1), lambda b, s: (b, 0, 0)),
            scratch_shapes=[pltpu.VMEM((C, 1), jnp.float32)],
        ),
        compiler_params=pltpu.CompilerParams(
            dimension_semantics=("parallel", "arbitrary"),
            vmem_limit_bytes=vmem_limit),
        cost_estimate=pl.CostEstimate(
            flops=int(B * C * HW + 4 * B * C * max(hid, 1)),
            transcendentals=int(transc),
            bytes_accessed=int(B * C * HW * elt + B * C * 4)),
    )(x3, w1t, b1r, w2r, b2c)

    out3 = pl.pallas_call(
        _rescale_kernel,
        out_shape=jax.ShapeDtypeStruct((B, C, HW), x.dtype),
        grid_spec=pltpu.PrefetchScalarGridSpec(
            num_scalar_prefetch=0,
            grid=(B, n_hw),
            in_specs=[
                pl.BlockSpec((1, C, thw), lambda b, s: (b, 0, s)),
                pl.BlockSpec((1, C, 1), lambda b, s: (b, 0, 0)),
            ],
            out_specs=pl.BlockSpec((1, C, thw), lambda b, s: (b, 0, s)),
        ),
        compiler_params=pltpu.CompilerParams(
            dimension_semantics=("parallel", "parallel"),
            vmem_limit_bytes=vmem_limit),
        cost_estimate=pl.CostEstimate(
            flops=int(B * C * HW),
            transcendentals=0,
            bytes_accessed=int(bytes_io)),
    )(x3, gate)
    return out3.reshape(B, C, H, W)


def _reference(x, w1, b1, w2, b2):
    """Pure-JAX f32 reference mirroring the PyTorch module."""
    xf = x.astype(jnp.float32)
    s = jnp.mean(xf, axis=(2, 3))                                   # (B, C)
    h = s @ jnp.asarray(w1, jnp.float32).T + jnp.asarray(b1, jnp.float32)
    h = jnp.where(h >= 0.0, h, 0.05 * h)
    g = jax.nn.sigmoid(h @ jnp.asarray(w2, jnp.float32).T + jnp.asarray(b2, jnp.float32))
    return xf * g[:, :, None, None]


if __name__ == "__main__":
    key = jax.random.PRNGKey(0)
    keys = jax.random.split(key, 10)

    # --- 1) main shapes (fused path): B=2, C=4, H=W=16, se_reduction=0.5 -> hid=2
    B, C, H, W = 2, 4, 16, 16
    hid = int(C * 0.5)
    x = jax.random.normal(keys[0], (B, C, H, W), dtype=jnp.float32)
    w1 = jax.random.normal(keys[1], (hid, C), dtype=jnp.float32) * 0.3
    b1 = jax.random.normal(keys[2], (hid,), dtype=jnp.float32) * 0.1
    w2 = jax.random.normal(keys[3], (C, hid), dtype=jnp.float32) * 0.3
    b2 = jax.random.normal(keys[4], (C,), dtype=jnp.float32) * 0.1

    out = jax.block_until_ready(se_recalibration(x, w1, b1, w2, b2))
    ref = _reference(x, w1, b1, w2, b2)
    assert out.dtype == x.dtype
    assert jnp.allclose(out, ref, atol=1e-5, rtol=1e-5), "fused f32 path mismatch"

    # --- 2) native-dtype path: bf16 in -> bf16 out (f32 pooling/MLP accumulation)
    xb = x.astype(jnp.bfloat16)
    outb = jax.block_until_ready(se_recalibration(xb, w1, b1, w2, b2))
    refb = _reference(xb, w1, b1, w2, b2)
    assert outb.dtype == jnp.bfloat16
    assert jnp.allclose(outb.astype(jnp.float32), refb, atol=2e-2, rtol=2e-2), \
        "bf16 path mismatch"

    # --- 3) split path (HW-tiled gate + parallel rescale) with a non-128-aligned
    #        spatial size to exercise the masked ragged HW tile.
    B2, C2, H2, W2 = 2, 8, 12, 12          # HW = 144 -> tiles of 128 + ragged 16
    hid2 = int(C2 * 0.5)
    x2 = jax.random.normal(keys[5], (B2, C2, H2, W2), dtype=jnp.float32)
    w1b = jax.random.normal(keys[6], (hid2, C2), dtype=jnp.float32) * 0.3
    b1b = jax.random.normal(keys[7], (hid2,), dtype=jnp.float32) * 0.1
    w2b = jax.random.normal(keys[8], (C2, hid2), dtype=jnp.float32) * 0.3
    b2b = jax.random.normal(keys[9], (C2,), dtype=jnp.float32) * 0.1

    out2 = jax.block_until_ready(
        se_recalibration(x2, w1b, b1b, w2b, b2b, force_split=True, max_hw_tile=128))
    ref2 = _reference(x2, w1b, b1b, w2b, b2b)
    assert jnp.allclose(out2, ref2, atol=1e-5, rtol=1e-5), "split path mismatch"

    # --- 4) fused path with a non-128-aligned spatial size (no HBM pad / slice)
    out4 = jax.block_until_ready(se_recalibration(x2, w1b, b1b, w2b, b2b))
    assert jnp.allclose(out4, ref2, atol=1e-5, rtol=1e-5), "fused ragged-HW mismatch"

    print("KERNEL_OK")
</pallas_src>

<mosaic_0001>
module attributes {stable_mosaic.version = 11 : i64} {
  func.func @_fused_kernel(%arg0: i32, %arg1: memref<8x256xf32, #tpu.memory_space<vmem>>, %arg2: memref<4x2xf32, #tpu.memory_space<vmem>>, %arg3: memref<1x2xf32, #tpu.memory_space<vmem>>, %arg4: memref<4x2xf32, #tpu.memory_space<vmem>>, %arg5: memref<4x1xf32, #tpu.memory_space<vmem>>, %arg6: memref<8x256xf32, #tpu.memory_space<vmem>>, %arg7: memref<8x1xf32, #tpu.memory_space<vmem>>) attributes {dimension_semantics = [#tpu.dimension_semantics<parallel>], iteration_bounds = array<i64: 1>, scalar_prefetch = 0 : i64, scratch_operands = 1 : i64, tpu.core_type = #tpu.core_type<tc>, window_params = [{transform_indices = @transform_0, window_bounds = array<i64: 8, 256>}, {pipeline_mode = #tpu.pipeline_mode<synchronous>, transform_indices = @transform_1, window_bounds = array<i64: 4, 2>}, {pipeline_mode = #tpu.pipeline_mode<synchronous>, transform_indices = @transform_2, window_bounds = array<i64: 1, 2>}, {pipeline_mode = #tpu.pipeline_mode<synchronous>, transform_indices = @transform_3, window_bounds = array<i64: 4, 2>}, {pipeline_mode = #tpu.pipeline_mode<synchronous>, transform_indices = @transform_4, window_bounds = array<i64: 4, 1>}, {transform_indices = @transform_5, window_bounds = array<i64: 8, 256>}]} {
    %c0 = arith.constant 0 : index
    %c0_0 = arith.constant 0 : index
    %0 = vector.load %arg1[%c0, %c0_0] : memref<8x256xf32, #tpu.memory_space<vmem>>, vector<8x256xf32>
    %cst = arith.constant dense<0.000000e+00> : vector<8xf32>
    %1 = vector.multi_reduction <add>, %0, %cst [1] : vector<8x256xf32> to vector<8xf32>
    %2 = vector.shape_cast %1 : vector<8xf32> to vector<8x1xf32>
    %cst_1 = arith.constant 3.906250e-03 : f32
    %3 = vector.broadcast %cst_1 : f32 to vector<8x1xf32>
    %4 = arith.mulf %2, %3 : vector<8x1xf32>
    %c0_2 = arith.constant 0 : index
    %c0_3 = arith.constant 0 : index
    %5 = vector.load %arg2[%c0_2, %c0_3] : memref<4x2xf32, #tpu.memory_space<vmem>>, vector<4x2xf32>
    %c0_4 = arith.constant 0 : index
    %c0_5 = arith.constant 0 : index
    %6 = vector.load %arg3[%c0_4, %c0_5] : memref<1x2xf32, #tpu.memory_space<vmem>>, vector<1x2xf32>
    %c0_6 = arith.constant 0 : index
    %c0_7 = arith.constant 0 : index
    %7 = vector.load %arg4[%c0_6, %c0_7] : memref<4x2xf32, #tpu.memory_space<vmem>>, vector<4x2xf32>
    %c0_8 = arith.constant 0 : index
    %c0_9 = arith.constant 0 : index
    %8 = vector.load %arg5[%c0_8, %c0_9] : memref<4x1xf32, #tpu.memory_space<vmem>>, vector<4x1xf32>
    %9 = vector.extract_strided_slice %4 {offsets = [0, 0], sizes = [4, 1], strides = [1, 1]} : vector<8x1xf32> to vector<4x1xf32>
    %10 = vector.broadcast %9 : vector<4x1xf32> to vector<4x2xf32>
    %11 = arith.mulf %10, %5 : vector<4x2xf32>
    %cst_10 = arith.constant dense<0.000000e+00> : vector<2xf32>
    %12 = vector.multi_reduction <add>, %11, %cst_10 [0] : vector<4x2xf32> to vector<2xf32>
    %13 = vector.shape_cast %12 : vector<2xf32> to vector<1x2xf32>
    %14 = arith.addf %13, %6 : vector<1x2xf32>
    %cst_11 = arith.constant 0.000000e+00 : f32
    %15 = vector.broadcast %cst_11 : f32 to vector<1x2xf32>
    %16 = arith.cmpf oge, %14, %15 : vector<1x2xf32>
    %cst_12 = arith.constant 5.000000e-02 : f32
    %17 = vector.broadcast %cst_12 : f32 to vector<1x2xf32>
    %18 = arith.mulf %17, %14 : vector<1x2xf32>
    %19 = arith.select %16, %14, %18 : vector<1x2xi1>, vector<1x2xf32>
    %20 = vector.broadcast %19 : vector<1x2xf32> to vector<4x2xf32>
    %21 = arith.mulf %20, %7 : vector<4x2xf32>
    %cst_13 = arith.constant dense<0.000000e+00> : vector<4xf32>
    %22 = vector.multi_reduction <add>, %21, %cst_13 [1] : vector<4x2xf32> to vector<4xf32>
    %23 = vector.shape_cast %22 : vector<4xf32> to vector<4x1xf32>
    %24 = arith.addf %23, %8 : vector<4x1xf32>
    %cst_14 = arith.constant 0.000000e+00 : f32
    %25 = vector.broadcast %cst_14 : f32 to vector<4x1xf32>
    %26 = arith.subf %25, %24 : vector<4x1xf32>
    %27 = math.exp %26 : vector<4x1xf32>
    %cst_15 = arith.constant 1.000000e+00 : f32
    %28 = vector.broadcast %cst_15 : f32 to vector<4x1xf32>
    %29 = arith.addf %28, %27 : vector<4x1xf32>
    %cst_16 = arith.constant 1.000000e+00 : f32
    %30 = vector.broadcast %cst_16 : f32 to vector<4x1xf32>
    %31 = arith.divf %30, %29 : vector<4x1xf32>
    %c0_17 = arith.constant 0 : index
    %c0_18 = arith.constant 0 : index
    %32 = vector.load %arg7[%c0_17, %c0_18] : memref<8x1xf32, #tpu.memory_space<vmem>>, vector<4x1xf32>
    tpu.vector_store %arg7[%c0_17, %c0_18], %31 {strides = array<i32>} : memref<8x1xf32, #tpu.memory_space<vmem>>, vector<4x1xf32>,
    %33 = vector.extract_strided_slice %4 {offsets = [4, 0], sizes = [4, 1], strides = [1, 1]} : vector<8x1xf32> to vector<4x1xf32>
    %34 = vector.broadcast %33 : vector<4x1xf32> to vector<4x2xf32>
    %35 = arith.mulf %34, %5 : vector<4x2xf32>
    %cst_19 = arith.constant dense<0.000000e+00> : vector<2xf32>
    %36 = vector.multi_reduction <add>, %35, %cst_19 [0] : vector<4x2xf32> to vector<2xf32>
    %37 = vector.shape_cast %36 : vector<2xf32> to vector<1x2xf32>
    %38 = arith.addf %37, %6 : vector<1x2xf32>
    %cst_20 = arith.constant 0.000000e+00 : f32
    %39 = vector.broadcast %cst_20 : f32 to vector<1x2xf32>
    %40 = arith.cmpf oge, %38, %39 : vector<1x2xf32>
    %cst_21 = arith.constant 5.000000e-02 : f32
    %41 = vector.broadcast %cst_21 : f32 to vector<1x2xf32>
    %42 = arith.mulf %41, %38 : vector<1x2xf32>
    %43 = arith.select %40, %38, %42 : vector<1x2xi1>, vector<1x2xf32>
    %44 = vector.broadcast %43 : vector<1x2xf32> to vector<4x2xf32>
    %45 = arith.mulf %44, %7 : vector<4x2xf32>
    %cst_22 = arith.constant dense<0.000000e+00> : vector<4xf32>
    %46 = vector.multi_reduction <add>, %45, %cst_22 [1] : vector<4x2xf32> to vector<4xf32>
    %47 = vector.shape_cast %46 : vector<4xf32> to vector<4x1xf32>
    %48 = arith.addf %47, %8 : vector<4x1xf32>
    %cst_23 = arith.constant 0.000000e+00 : f32
    %49 = vector.broadcast %cst_23 : f32 to vector<4x1xf32>
    %50 = arith.subf %49, %48 : vector<4x1xf32>
    %51 = math.exp %50 : vector<4x1xf32>
    %cst_24 = arith.constant 1.000000e+00 : f32
    %52 = vector.broadcast %cst_24 : f32 to vector<4x1xf32>
    %53 = arith.addf %52, %51 : vector<4x1xf32>
    %cst_25 = arith.constant 1.000000e+00 : f32
    %54 = vector.broadcast %cst_25 : f32 to vector<4x1xf32>
    %55 = arith.divf %54, %53 : vector<4x1xf32>
    %c4 = arith.constant 4 : index
    %c0_26 = arith.constant 0 : index
    %56 = vector.load %arg7[%c4, %c0_26] : memref<8x1xf32, #tpu.memory_space<vmem>>, vector<4x1xf32>
    tpu.vector_store %arg7[%c4, %c0_26], %55 {strides = array<i32>} : memref<8x1xf32, #tpu.memory_space<vmem>>, vector<4x1xf32>,
    %c0_27 = arith.constant 0 : index
    %c0_28 = arith.constant 0 : index
    %57 = vector.load %arg1[%c0_27, %c0_28] : memref<8x256xf32, #tpu.memory_space<vmem>>, vector<8x256xf32>
    %c0_29 = arith.constant 0 : index
    %c0_30 = arith.constant 0 : index
    %58 = vector.load %arg7[%c0_29, %c0_30] : memref<8x1xf32, #tpu.memory_space<vmem>>, vector<8x1xf32>
    %59 = vector.broadcast %58 : vector<8x1xf32> to vector<8x256xf32>
    %60 = arith.mulf %57, %59 : vector<8x256xf32>
    %c0_31 = arith.constant 0 : index
    %c0_32 = arith.constant 0 : index
    %61 = vector.load %arg6[%c0_31, %c0_32] : memref<8x256xf32, #tpu.memory_space<vmem>>, vector<8x256xf32>
    tpu.vector_store %arg6[%c0_31, %c0_32], %60 {strides = array<i32>} : memref<8x256xf32, #tpu.memory_space<vmem>>, vector<8x256xf32>,
    return
  }
  func.func @transform_0(%arg0: i32) -> (i32, i32) {
    %c0_i32 = arith.constant 0 : i32
    %c0_i32_0 = arith.constant 0 : i32
    return %arg0, %c0_i32 : i32, i32
  }
  func.func @transform_1(%arg0: i32) -> (i32, i32) {
    %c0_i32 = arith.constant 0 : i32
    %c0_i32_0 = arith.constant 0 : i32
    %c0_i32_1 = arith.constant 0 : i32
    return %c0_i32, %c0_i32_0 : i32, i32
  }
  func.func @transform_2(%arg0: i32) -> (i32, i32) {
    %c0_i32 = arith.constant 0 : i32
    %c0_i32_0 = arith.constant 0 : i32
    %c0_i32_1 = arith.constant 0 : i32
    return %c0_i32, %c0_i32_0 : i32, i32
  }
  func.func @transform_3(%arg0: i32) -> (i32, i32) {
    %c0_i32 = arith.constant 0 : i32
    %c0_i32_0 = arith.constant 0 : i32
    %c0_i32_1 = arith.constant 0 : i32
    return %c0_i32, %c0_i32_0 : i32, i32
  }
  func.func @transform_4(%arg0: i32) -> (i32, i32) {
    %c0_i32 = arith.constant 0 : i32
    %c0_i32_0 = arith.constant 0 : i32
    %c0_i32_1 = arith.constant 0 : i32
    return %c0_i32, %c0_i32_0 : i32, i32
  }
  func.func @transform_5(%arg0: i32) -> (i32, i32) {
    %c0_i32 = arith.constant 0 : i32
    %c0_i32_0 = arith.constant 0 : i32
    return %arg0, %c0_i32 : i32, i32
  }
}

</mosaic_0001>

<llo_original>
// kernel: tpu_custom_call.1
$region0: #{tpu_custom_call.1}
  #allocation0 [shape = 'u32[]', space=smem, size = 0x4, offset = 0x4, fixed_abs, tag = 'smem constant byte address 0x4 - core index']
  #allocation1 [shape = 'u32[144,128]{1,0:T(1,128)}', space=vmem, size = 0x12000, scoped, tag = 'internal scratch']
  #allocation2 [shape = 'f32[8,1]{1,0:T(8,128)}', space=vmem, size = 0x1000, scoped, tag = 'scratch operand']
  %s0 = inlined_call_operand.vmem [shape: f32[8,256], index: 0, kind: input, shape index: {}]
  %s1 = inlined_call_operand.vmem [shape: f32[4,2], index: 1, kind: input, shape index: {}]
  %s2 = inlined_call_operand.vmem [shape: f32[1,2], index: 2, kind: input, shape index: {}]
  %s3 = inlined_call_operand.vmem [shape: f32[4,2], index: 3, kind: input, shape index: {}]
  %s4 = inlined_call_operand.vmem [shape: f32[4,1], index: 4, kind: input, shape index: {}]
  %s5 = inlined_call_operand.hbm [shape: f32[8,256], index: 5, kind: output, shape index: {}]
  %s6 = sld [smem:[#allocation0]]
  $region30: #{tpu_custom_call.1} parent=0
    _
  %s8 = ssub.s32 1, %s6
  %s9 = scalar_select 0, %s8, %s6
  $region1: #{tpu_custom_call.1} parent=0
    #allocation3 [shape = 'u8[8192]{0}', space=vmem, size = 0x2000, scoped, tag = 'output window, operand 0, single buffered']
    #allocation4 [shape = 's32[1]{0}', space=sflag, size = 0x4, scoped, tag = 'scoped memory for tpu_custom_call.1']
    %10 = vsyncpa [#allocation4], 0
    // Predicated region
    $region2: #{tpu_custom_call.1} parent=1 // pred_check
      _
    $region3: #{tpu_custom_call.1} parent=1 // pred_check_branch
      %12 = sbr.rel (0) target = $region5
    $region4: #{tpu_custom_call.1} parent=1 // pred_region
      _
    $region5: #{tpu_custom_call.1} parent=1 // pred_fallthru
      _
    // Predicated region
    $region6: #{tpu_custom_call.1} parent=1 // pred_check
      _
    $region7: #{tpu_custom_call.1} parent=1 // pred_check_branch
      %14 = sbr.rel (0) target = $region9
    $region8: #{tpu_custom_call.1} parent=1 // pred_region
      _
    $region9: #{tpu_custom_call.1} parent=1 // pred_fallthru
      _
    // Predicated region
    $region10: #{tpu_custom_call.1} parent=1 // pred_check
      _
    $region11: #{tpu_custom_call.1} parent=1 // pred_check_branch
      %16 = sbr.rel (0) target = $region13
    $region12: #{tpu_custom_call.1} parent=1 // pred_region
      _
    $region13: #{tpu_custom_call.1} parent=1 // pred_fallthru
      _
    // Predicated region
    $region14: #{tpu_custom_call.1} parent=1 // pred_check
      _
    $region15: #{tpu_custom_call.1} parent=1 // pred_check_branch
      %18 = sbr.rel (0) target = $region17
    $region16: #{tpu_custom_call.1} parent=1 // pred_region
      _
    $region17: #{tpu_custom_call.1} parent=1 // pred_fallthru
      _
    // Predicated region
    $region18: #{tpu_custom_call.1} parent=1 // pred_check
      _
    $region19: #{tpu_custom_call.1} parent=1 // pred_check_branch
      %20 = sbr.rel (0) target = $region21
    $region20: #{tpu_custom_call.1} parent=1 // pred_region
      _
    $region21: #{tpu_custom_call.1} parent=1 // pred_fallthru
      _
    %v21 = vld [vmem:[%s0] sm:$0xff]
    %v22 = vld [vmem:[%s0 + $0x8] sm:$0xff]
    %v23 = vadd.f32 %v21, %v22
    %24 = vadd.xlane.f32.xlu0 %v23
    %v25 = vpop.xlane.xlu0 %24
    %v26 = vmul.f32 %v25, 0.00390625
    %v27 = vld [vmem:[%s1] sm:$0xf]
    %v28 = vld [vmem:[%s2] sm:$0x1]
    %v29 = vld [vmem:[%s3] sm:$0xf]
    %v30 = vld [vmem:[%s4] sm:$0xf]
    %v31 = vmul.f32 %v26, %v27
    %vm32 = vcmask 11264
    %v33 = vsel %vm32, %v31, 0.0
    %v34 = vrot.slane %v33, 4
    %v35 = vadd.f32 %v33, %v34
    %v36 = vrot.slane %v35, 2
    %v37 = vadd.f32 %v35, %v36
    %v38 = vrot.slane %v37, 1
    %v39 = vadd.f32 %v37, %v38
    %v40 = vadd.f32 %v39, %v28
    %vm41 = vcmp.ge.f32.partialorder %v40, 0.0
    %v42 = vmul.f32 %v40, 0.05
    %v43 = vsel %vm41, %v40, %v42
    %v44 = vlaneseq
    %v45 = vshrl.u32 %v44, 7
    %v46 = vsub.s32 0, %v45
    %v47 = vrot.slane %v43, %v46
    %v48 = vmul.f32 %v47, %v29
    %v49 = vsel %vm32, %v48, 0.0
    %50 = vadd.xlane.f32.xlu0 %v49
    %v51 = vpop.xlane.xlu0 %50
    %v52 = vadd.f32 %v51, %v30
    %v53 = vsub.f32 0.0, %v52
    %v54 = vmul.f32 %v53, 1.442695
    %v55 = vpow.pop %v54
    %v56 = vadd.f32 %v55, 1.0
    %v57 = vrcp.pop %v56
    %v58 = vmul.f32 1.0, %v57
    %vm59 = vcmask 3072
    %60 = vst.msk [vmem:[#allocation2] sm:$0xf] %vm59, %v58
    %v62 = vrot.slane %v27, 4
    %v64 = vmul.f32 %v26, %v62
    %v66 = vrot.slane %v64, 4
    %v68 = vsel %vm32, %v66, 0.0
    %v69 = vrot.slane %v68, 4
    %v70 = vadd.f32 %v68, %v69
    %v71 = vrot.slane %v70, 2
    %v72 = vadd.f32 %v70, %v71
    %v73 = vrot.slane %v72, 1
    %v74 = vadd.f32 %v72, %v73
    %v75 = vadd.f32 %v74, %v28
    %vm76 = vcmp.ge.f32.partialorder %v75, 0.0
    %v77 = vmul.f32 %v75, 0.05
    %v78 = vsel %vm76, %v75, %v77
    %v79 = vlaneseq
    %v80 = vshrl.u32 %v79, 7
    %v81 = vsub.s32 0, %v80
    %v82 = vrot.slane %v78, %v81
    %v83 = vmul.f32 %v82, %v29
    %v84 = vsel %vm32, %v83, 0.0
    %85 = vadd.xlane.f32.xlu0 %v84
    %v86 = vpop.xlane.xlu0 %85
    %v87 = vadd.f32 %v86, %v30
    %v88 = vsub.f32 0.0, %v87
    %v89 = vmul.f32 %v88, 1.442695
    %v90 = vpow.pop %v89
    %v91 = vadd.f32 %v90, 1.0
    %v92 = vrcp.pop %v91
    %v93 = vmul.f32 1.0, %v92
    %94 = vst.msk [vmem:[#allocation2 + $0x4] sm:$0xf] %vm59, %v93
    %v95 = vld [vmem:[%s0] sm:$0xff]
    %v96 = vld [vmem:[%s0 + $0x8] sm:$0xff]
    %v97 = vld [vmem:[#allocation2] sm:$0xff]
    %99 = vset.pattern.permute.xlu0 0
    %100 = vperm.xlu0 %99, %v97
    %v101 = vpop.permute.xlu0 %100
    %v103 = vmul.f32 %v95, %v101
    %v104 = vmul.f32 %v96, %v101
    %105 = vst [vmem:[#allocation3] sm:$0xff] %v103
    %106 = vst [vmem:[#allocation3 + $0x8] sm:$0xff] %v104
    // Predicated region
    $region22: #{tpu_custom_call.1} parent=1 // pred_check
      _
    $region23: #{tpu_custom_call.1} parent=1 // pred_check_branch
      %108 = sbr.rel (0) target = $region25
    $region24: #{tpu_custom_call.1} parent=1 // pred_region
      %s110 = ssub.s32 256, 256
      %111 = vsyncadd [#allocation4], %s110
      %s113 = sshll.u32 [#allocation3], 4
      %s114 = int_to_ptr.vmem [resolvable:$true] %s113
      %116 = dma.vmem_to_hbm [thread:$0]  %s114, 256, %s5, [#allocation4]
    $region25: #{tpu_custom_call.1} parent=1 // pred_fallthru
      _
    // Predicated region
    $region26: #{tpu_custom_call.1} parent=1 // pred_check
      _
    $region27: #{tpu_custom_call.1} parent=1 // pred_check_branch
      %118 = sbr.rel (0) target = $region29
    $region28: #{tpu_custom_call.1} parent=1 // pred_region
      %119 = dma.done [#allocation4], 256
    $region29: #{tpu_custom_call.1} parent=1 // pred_fallthru
      _
    %120 = vsyncpa [#allocation4], 1

</llo_original>
